<compile_context>
chip_gen: v7x
topology: tpu7x:2x2x1
jax: 0.10.0
libtpu: 0.0.40
codegen_flags: <defaults>
</compile_context>

<pallas_src>
import functools

import jax
import jax.numpy as jnp
from jax.experimental import pallas as pl
from jax.experimental.pallas import tpu as pltpu


def _round_up(x, m):
    return (x + m - 1) // m * m


def _dynamics_kernel(x_ref, emb_ref, params_ref, x_out_ref, reward_ref,
                     *, B, CP, H, W):
    """x_ref/emb_ref: (CP, B*H*W)   params_ref: (R, NP) packed blob
       x_out_ref:     (CP, B*H*W)   reward_ref: (8, 128)"""
    NSP = H * W
    BNSP = B * NSP
    inv_nsp = 1.0 / float(NSP)

    # --- unpack the single parameter blob (static slices) --------------------
    wmat = params_ref[0:CP, 0:9 * CP]                  # (CP, 9*CP) conv weight
    cb = params_ref[0:CP, 9 * CP:9 * CP + 1]           # (CP, 1) conv bias
    rw = params_ref[0:CP, 9 * CP + 1:9 * CP + 2]       # (CP, 1) 1x1 reward-conv w
    w1 = params_ref[CP + 9:CP + 25, 0:1]               # (16, 1) fc_reward_hidden.w
    b1 = params_ref[CP + 9:CP + 25, 1:2]               # (16, 1) fc_reward_hidden.b
    w2 = params_ref[CP + 9:CP + 25, 2:3]               # (16, 1) fc_reward_output.w
    rb = params_ref[CP + 9:CP + 10, 3:4]               # (1, 1)  reward-conv bias
    b2 = params_ref[CP + 9:CP + 10, 4:5]               # (1, 1)  fc_reward_output.b

    # latent + action embedding (embedding pre-expanded to (CP, BNSP) in wrapper)
    xb = x_ref[...] + emb_ref[...]                     # (CP, BNSP), dense tiles

    # im2col via lane rotation + precomputed per-tap boundary masks.
    # tap_t[c, p] = x[c, p + s] if the (dy,dx) neighbour of p is inside the
    # image (and inside the same batch segment), else 0; s = dy*W + dx.
    taps = []
    for ky in range(3):
        for kx in range(3):
            dy, dx = ky - 1, kx - 1
            s = dy * W + dx
            t = ky * 3 + kx
            if s == 0:
                taps.append(xb)                        # centre tap: mask is all-ones
            else:
                rolled = pltpu.roll(xb, (-s) % BNSP, 1)          # XLU rotate
                m = params_ref[CP + t:CP + t + 1, 0:BNSP]        # (1, BNSP) mask
                taps.append(rolled * m)                          # one vmul per tap
    col = jnp.concatenate(taps, axis=0)                # (9*CP, BNSP), aligned concat

    # 3x3 "same" conv for the whole batch == ONE MXU matmul, lane-dense N.
    conv = jnp.dot(wmat, col, preferred_element_type=jnp.float32)   # (CP, BNSP)
    xo = jnp.maximum(conv + cb, 0.0)                   # ReLU
    x_out_ref[...] = xo.astype(x_out_ref.dtype)        # full-tile unmasked stores

    # --- reward head, all batches at once (batch in lanes) -------------------
    # spatial mean folded in front of the (linear) 1x1 reward conv.
    means = jnp.concatenate(
        [jnp.sum(xo[:, b * NSP:(b + 1) * NSP], axis=1, keepdims=True)
         for b in range(B)], axis=1) * inv_nsp                       # (CP, B)
    r = jnp.sum(means * rw, axis=0, keepdims=True) + rb              # (1, B)
    hidden = jnp.maximum(r * w1 + b1, 0.0)                           # (16, B)
    rwd = jnp.sum(hidden * w2, axis=0, keepdims=True) + b2           # (1, B)
    row = jnp.concatenate([rwd, jnp.zeros((1, 128 - B), jnp.float32)], axis=1)
    reward_ref[...] = jnp.broadcast_to(row, (8, 128)).astype(reward_ref.dtype)


def pack_params(params, B, H, W):
    """Build the packed parameter blob ONCE at init (hoisted out of the
    per-call path): conv weights (channel-padded), head params and the 9
    per-tap boundary masks (length B*H*W, incl. batch-boundary bleed zeroing)."""
    C = int(params["conv_b"].shape[0])
    CP = _round_up(C, 8)                      # pad channels -> dense 8-sublane tiles
    NSP = H * W
    BNSP = B * NSP
    NP = _round_up(max(9 * CP + 2, BNSP, 5), 128)
    R = _round_up(CP + 9 + 16, 8)
    f32 = jnp.float32

    # (O, I, 3, 3) zero-padded to (CP, CP, 3, 3), then (O, ky, kx, I) ->
    # (CP, 9*CP): column index = (ky*3+kx)*CP + ci, matching col row order.
    cw = jnp.zeros((CP, CP, 3, 3), f32).at[:C, :C].set(params["conv_w"].astype(f32))
    wmat = jnp.transpose(cw, (0, 2, 3, 1)).reshape(CP, 9 * CP)

    # 9 combined (row & col validity) boundary masks, tiled per batch segment.
    q = jnp.arange(NSP, dtype=jnp.int32)
    row_i, col_i = q // W, q % W
    mask_rows = []
    for ky in range(3):
        for kx in range(3):
            dy, dx = ky - 1, kx - 1
            ok = ((row_i + dy >= 0) & (row_i + dy < H) &
                  (col_i + dx >= 0) & (col_i + dx < W)).astype(f32)  # (NSP,)
            mask_rows.append(jnp.tile(ok, (B,)))                     # (BNSP,)
    masks9 = jnp.stack(mask_rows, axis=0)                            # (9, BNSP)

    blob = jnp.zeros((R, NP), f32)
    blob = blob.at[0:CP, 0:9 * CP].set(wmat)
    blob = blob.at[0:C, 9 * CP].set(params["conv_b"].astype(f32))
    blob = blob.at[0:C, 9 * CP + 1].set(params["rconv_w"].reshape(C).astype(f32))
    blob = blob.at[CP:CP + 9, 0:BNSP].set(masks9)
    blob = blob.at[CP + 9:CP + 25, 0].set(params["fc1_w"].reshape(16).astype(f32))
    blob = blob.at[CP + 9:CP + 25, 1].set(params["fc1_b"].reshape(16).astype(f32))
    blob = blob.at[CP + 9:CP + 25, 2].set(params["fc2_w"].reshape(16).astype(f32))
    blob = blob.at[CP + 9, 3].set(params["rconv_b"][0].astype(f32))
    blob = blob.at[CP + 9, 4].set(params["fc2_b"][0].astype(f32))
    return blob


def dynamics_forward(latent_nchw, action, emb_table, blob):
    """latent_nchw: (B, C, H, W) f32, action: (B,) int32, blob: prepacked params.
       Returns (x NCHW, reward (B, 1))."""
    B, C, H, W = latent_nchw.shape
    CP = _round_up(C, 8)
    NSP = H * W
    BNSP = B * NSP

    # Layout plumbing (tiny XLA glue): channels-as-rows, batch*spatial-as-lanes.
    lat = latent_nchw.astype(jnp.float32).reshape(B, C, NSP)
    lat = lat.transpose(1, 0, 2).reshape(C, BNSP)
    lat = jnp.pad(lat, ((0, CP - C), (0, 0)))                        # (CP, BNSP)

    # Embedding gather (data-dependent row pick) stays in plain JAX.
    emb = emb_table[action].astype(jnp.float32)                      # (B, C)
    emb_exp = jnp.broadcast_to(emb.T[:, :, None], (C, B, NSP)).reshape(C, BNSP)
    emb_exp = jnp.pad(emb_exp, ((0, CP - C), (0, 0)))                # (CP, BNSP)

    R, NP = blob.shape
    kernel = functools.partial(_dynamics_kernel, B=B, CP=CP, H=H, W=W)

    x_flat, reward_row = pl.pallas_call(
        kernel,
        out_shape=(jax.ShapeDtypeStruct((CP, BNSP), jnp.float32),
                   jax.ShapeDtypeStruct((8, 128), jnp.float32)),
        grid=(1,),   # whole tiny batch in one step; per-step overhead paid once
        in_specs=[
            pl.BlockSpec((CP, BNSP), lambda i: (0, 0)),   # latent (padded chans)
            pl.BlockSpec((CP, BNSP), lambda i: (0, 0)),   # expanded action emb
            pl.BlockSpec((R, NP), lambda i: (0, 0)),      # packed params blob
        ],
        out_specs=(
            pl.BlockSpec((CP, BNSP), lambda i: (0, 0)),
            pl.BlockSpec((8, 128), lambda i: (0, 0)),
        ),
        compiler_params=pltpu.CompilerParams(
            dimension_semantics=("arbitrary",)),
    )(lat, emb_exp, blob)

    x_nchw = x_flat[:C].reshape(C, B, H, W).transpose(1, 0, 2, 3)
    reward = reward_row[0, :B].reshape(B, 1)
    return x_nchw, reward


def reference(latent_nchw, action, p):
    """Pure-JAX reference mirroring the PyTorch forward (NCHW)."""
    emb = p["emb"][action]                                   # (B, C)
    x = latent_nchw + emb[:, :, None, None]
    x = jax.lax.conv_general_dilated(
        x, p["conv_w"], window_strides=(1, 1), padding="SAME",
        dimension_numbers=("NCHW", "OIHW", "NCHW"))
    x = jnp.maximum(x + p["conv_b"][None, :, None, None], 0.0)
    rmap = jax.lax.conv_general_dilated(
        x, p["rconv_w"], window_strides=(1, 1), padding="SAME",
        dimension_numbers=("NCHW", "OIHW", "NCHW"))
    rmap = rmap + p["rconv_b"][None, :, None, None]
    r = rmap.mean(axis=(2, 3))                               # (B, 1)
    h = jnp.maximum(r @ p["fc1_w"].T + p["fc1_b"], 0.0)
    out = h @ p["fc2_w"].T + p["fc2_b"]
    return x, out


if __name__ == "__main__":
    B, C, H, W = 2, 4, 16, 16      # batch, latent_dim, spatial
    A = 8                          # max_action_size

    key = jax.random.PRNGKey(0)
    ks = jax.random.split(key, 11)
    params = {
        "emb":     0.1 * jax.random.normal(ks[0], (A, C), jnp.float32),
        "conv_w":  0.1 * jax.random.normal(ks[1], (C, C, 3, 3), jnp.float32),
        "conv_b":  0.1 * jax.random.normal(ks[2], (C,), jnp.float32),
        "rconv_w": 0.1 * jax.random.normal(ks[3], (1, C, 1, 1), jnp.float32),
        "rconv_b": 0.1 * jax.random.normal(ks[4], (1,), jnp.float32),
        "fc1_w":   0.1 * jax.random.normal(ks[5], (16, 1), jnp.float32),
        "fc1_b":   0.1 * jax.random.normal(ks[6], (16,), jnp.float32),
        "fc2_w":   0.1 * jax.random.normal(ks[7], (1, 16), jnp.float32),
        "fc2_b":   0.1 * jax.random.normal(ks[8], (1,), jnp.float32),
    }
    latent = jax.random.normal(ks[9], (B, C, H, W), jnp.float32)
    action = jax.random.randint(ks[10], (B,), 0, A, jnp.int32)

    # Packed ONCE at init (hoisted out of the per-call hot path).
    blob = jax.block_until_ready(pack_params(params, B, H, W))

    fwd = jax.jit(dynamics_forward)
    x_out, reward = fwd(latent, action, params["emb"], blob)
    jax.block_until_ready((x_out, reward))

    x_ref, r_ref = reference(latent, action, params)
    assert x_out.shape == (B, C, H, W) and reward.shape == (B, 1)
    assert jnp.allclose(x_out, x_ref, atol=1e-3, rtol=1e-3)
    assert jnp.allclose(reward, r_ref, atol=1e-3, rtol=1e-3)
    print("KERNEL_OK")
</pallas_src>

<mosaic_0001>
module attributes {stable_mosaic.version = 11 : i64} {
  func.func @_dynamics_kernel(%arg0: i32, %arg1: memref<8x512xf32, #tpu.memory_space<vmem>>, %arg2: memref<8x512xf32, #tpu.memory_space<vmem>>, %arg3: memref<40x512xf32, #tpu.memory_space<vmem>>, %arg4: memref<8x512xf32, #tpu.memory_space<vmem>>, %arg5: memref<8x128xf32, #tpu.memory_space<vmem>>) attributes {dimension_semantics = [#tpu.dimension_semantics<arbitrary>], iteration_bounds = array<i64: 1>, scalar_prefetch = 0 : i64, scratch_operands = 0 : i64, tpu.core_type = #tpu.core_type<tc>, window_params = [{pipeline_mode = #tpu.pipeline_mode<synchronous>, transform_indices = @transform_0, window_bounds = array<i64: 8, 512>}, {pipeline_mode = #tpu.pipeline_mode<synchronous>, transform_indices = @transform_1, window_bounds = array<i64: 8, 512>}, {pipeline_mode = #tpu.pipeline_mode<synchronous>, transform_indices = @transform_2, window_bounds = array<i64: 40, 512>}, {pipeline_mode = #tpu.pipeline_mode<synchronous>, transform_indices = @transform_3, window_bounds = array<i64: 8, 512>}, {pipeline_mode = #tpu.pipeline_mode<synchronous>, transform_indices = @transform_4, window_bounds = array<i64: 8, 128>}]} {
    %c0 = arith.constant 0 : index
    %c0_0 = arith.constant 0 : index
    %0 = vector.load %arg3[%c0, %c0_0] : memref<40x512xf32, #tpu.memory_space<vmem>>, vector<8x72xf32>
    %c0_1 = arith.constant 0 : index
    %c72 = arith.constant 72 : index
    %1 = vector.load %arg3[%c0_1, %c72] : memref<40x512xf32, #tpu.memory_space<vmem>>, vector<8x1xf32>
    %c0_2 = arith.constant 0 : index
    %c73 = arith.constant 73 : index
    %2 = vector.load %arg3[%c0_2, %c73] : memref<40x512xf32, #tpu.memory_space<vmem>>, vector<8x1xf32>
    %c17 = arith.constant 17 : index
    %c0_3 = arith.constant 0 : index
    %3 = vector.load %arg3[%c17, %c0_3] : memref<40x512xf32, #tpu.memory_space<vmem>>, vector<16x1xf32>
    %c17_4 = arith.constant 17 : index
    %c1 = arith.constant 1 : index
    %4 = vector.load %arg3[%c17_4, %c1] : memref<40x512xf32, #tpu.memory_space<vmem>>, vector<16x1xf32>
    %c17_5 = arith.constant 17 : index
    %c2 = arith.constant 2 : index
    %5 = vector.load %arg3[%c17_5, %c2] : memref<40x512xf32, #tpu.memory_space<vmem>>, vector<16x1xf32>
    %c17_6 = arith.constant 17 : index
    %c3 = arith.constant 3 : index
    %6 = vector.load %arg3[%c17_6, %c3] : memref<40x512xf32, #tpu.memory_space<vmem>>, vector<1x1xf32>
    %c17_7 = arith.constant 17 : index
    %c4 = arith.constant 4 : index
    %7 = vector.load %arg3[%c17_7, %c4] : memref<40x512xf32, #tpu.memory_space<vmem>>, vector<1x1xf32>
    %c0_8 = arith.constant 0 : index
    %c0_9 = arith.constant 0 : index
    %8 = vector.load %arg1[%c0_8, %c0_9] : memref<8x512xf32, #tpu.memory_space<vmem>>, vector<8x512xf32>
    %c0_10 = arith.constant 0 : index
    %c0_11 = arith.constant 0 : index
    %9 = vector.load %arg2[%c0_10, %c0_11] : memref<8x512xf32, #tpu.memory_space<vmem>>, vector<8x512xf32>
    %10 = arith.addf %8, %9 : vector<8x512xf32>
    %c17_i32 = arith.constant 17 : i32
    %11 = tpu.dynamic_rotate %10 by %c17_i32 dim 1 : vector<8x512xf32>, i32 -> vector<8x512xf32>
    %c8 = arith.constant 8 : index
    %c0_12 = arith.constant 0 : index
    %12 = vector.load %arg3[%c8, %c0_12] : memref<40x512xf32, #tpu.memory_space<vmem>>, vector<1x512xf32>
    %13 = vector.broadcast %12 : vector<1x512xf32> to vector<8x512xf32>
    %14 = arith.mulf %11, %13 : vector<8x512xf32>
    %c16_i32 = arith.constant 16 : i32
    %15 = tpu.dynamic_rotate %10 by %c16_i32 dim 1 : vector<8x512xf32>, i32 -> vector<8x512xf32>
    %c9 = arith.constant 9 : index
    %c0_13 = arith.constant 0 : index
    %16 = vector.load %arg3[%c9, %c0_13] : memref<40x512xf32, #tpu.memory_space<vmem>>, vector<1x512xf32>
    %17 = vector.broadcast %16 : vector<1x512xf32> to vector<8x512xf32>
    %18 = arith.mulf %15, %17 : vector<8x512xf32>
    %c15_i32 = arith.constant 15 : i32
    %19 = tpu.dynamic_rotate %10 by %c15_i32 dim 1 : vector<8x512xf32>, i32 -> vector<8x512xf32>
    %c10 = arith.constant 10 : index
    %c0_14 = arith.constant 0 : index
    %20 = vector.load %arg3[%c10, %c0_14] : memref<40x512xf32, #tpu.memory_space<vmem>>, vector<1x512xf32>
    %21 = vector.broadcast %20 : vector<1x512xf32> to vector<8x512xf32>
    %22 = arith.mulf %19, %21 : vector<8x512xf32>
    %c1_i32 = arith.constant 1 : i32
    %23 = tpu.dynamic_rotate %10 by %c1_i32 dim 1 : vector<8x512xf32>, i32 -> vector<8x512xf32>
    %c11 = arith.constant 11 : index
    %c0_15 = arith.constant 0 : index
    %24 = vector.load %arg3[%c11, %c0_15] : memref<40x512xf32, #tpu.memory_space<vmem>>, vector<1x512xf32>
    %25 = vector.broadcast %24 : vector<1x512xf32> to vector<8x512xf32>
    %26 = arith.mulf %23, %25 : vector<8x512xf32>
    %c511_i32 = arith.constant 511 : i32
    %27 = tpu.dynamic_rotate %10 by %c511_i32 dim 1 : vector<8x512xf32>, i32 -> vector<8x512xf32>
    %c13 = arith.constant 13 : index
    %c0_16 = arith.constant 0 : index
    %28 = vector.load %arg3[%c13, %c0_16] : memref<40x512xf32, #tpu.memory_space<vmem>>, vector<1x512xf32>
    %29 = vector.broadcast %28 : vector<1x512xf32> to vector<8x512xf32>
    %30 = arith.mulf %27, %29 : vector<8x512xf32>
    %c497_i32 = arith.constant 497 : i32
    %31 = tpu.dynamic_rotate %10 by %c497_i32 dim 1 : vector<8x512xf32>, i32 -> vector<8x512xf32>
    %c14 = arith.constant 14 : index
    %c0_17 = arith.constant 0 : index
    %32 = vector.load %arg3[%c14, %c0_17] : memref<40x512xf32, #tpu.memory_space<vmem>>, vector<1x512xf32>
    %33 = vector.broadcast %32 : vector<1x512xf32> to vector<8x512xf32>
    %34 = arith.mulf %31, %33 : vector<8x512xf32>
    %c496_i32 = arith.constant 496 : i32
    %35 = tpu.dynamic_rotate %10 by %c496_i32 dim 1 : vector<8x512xf32>, i32 -> vector<8x512xf32>
    %c15 = arith.constant 15 : index
    %c0_18 = arith.constant 0 : index
    %36 = vector.load %arg3[%c15, %c0_18] : memref<40x512xf32, #tpu.memory_space<vmem>>, vector<1x512xf32>
    %37 = vector.broadcast %36 : vector<1x512xf32> to vector<8x512xf32>
    %38 = arith.mulf %35, %37 : vector<8x512xf32>
    %c495_i32 = arith.constant 495 : i32
    %39 = tpu.dynamic_rotate %10 by %c495_i32 dim 1 : vector<8x512xf32>, i32 -> vector<8x512xf32>
    %c16 = arith.constant 16 : index
    %c0_19 = arith.constant 0 : index
    %40 = vector.load %arg3[%c16, %c0_19] : memref<40x512xf32, #tpu.memory_space<vmem>>, vector<1x512xf32>
    %41 = vector.broadcast %40 : vector<1x512xf32> to vector<8x512xf32>
    %42 = arith.mulf %39, %41 : vector<8x512xf32>
    %43 = tpu.concatenate %14, %18, %22, %26, %10, %30, %34, %38, %42 in 0 : vector<8x512xf32>, vector<8x512xf32>, vector<8x512xf32>, vector<8x512xf32>, vector<8x512xf32>, vector<8x512xf32>, vector<8x512xf32>, vector<8x512xf32>, vector<8x512xf32> -> vector<72x512xf32>
    %cst = arith.constant dense<0.000000e+00> : vector<8x512xf32>
    %44 = tpu.matmul %0, %43, %cst {dimension_numbers = #tpu.dot_dimension_numbers<[1], [0], [0], [1], [0, 0, 1, 1], [], []>} : vector<8x72xf32>, vector<72x512xf32>, vector<8x512xf32> -> vector<8x512xf32>
    %45 = vector.broadcast %1 : vector<8x1xf32> to vector<8x512xf32>
    %46 = arith.addf %44, %45 : vector<8x512xf32>
    %cst_20 = arith.constant 0.000000e+00 : f32
    %47 = vector.broadcast %cst_20 : f32 to vector<8x512xf32>
    %48 = arith.maximumf %46, %47 : vector<8x512xf32>
    %c0_21 = arith.constant 0 : index
    %c0_22 = arith.constant 0 : index
    %49 = vector.load %arg4[%c0_21, %c0_22] : memref<8x512xf32, #tpu.memory_space<vmem>>, vector<8x512xf32>
    tpu.vector_store %arg4[%c0_21, %c0_22], %48 {strides = array<i32>} : memref<8x512xf32, #tpu.memory_space<vmem>>, vector<8x512xf32>,
    %50 = vector.extract_strided_slice %48 {offsets = [0, 0], sizes = [8, 256], strides = [1, 1]} : vector<8x512xf32> to vector<8x256xf32>
    %cst_23 = arith.constant dense<0.000000e+00> : vector<8xf32>
    %51 = vector.multi_reduction <add>, %50, %cst_23 [1] : vector<8x256xf32> to vector<8xf32>
    %52 = vector.shape_cast %51 : vector<8xf32> to vector<8x1xf32>
    %53 = vector.extract_strided_slice %48 {offsets = [0, 256], sizes = [8, 256], strides = [1, 1]} : vector<8x512xf32> to vector<8x256xf32>
    %cst_24 = arith.constant dense<0.000000e+00> : vector<8xf32>
    %54 = vector.multi_reduction <add>, %53, %cst_24 [1] : vector<8x256xf32> to vector<8xf32>
    %55 = vector.shape_cast %54 : vector<8xf32> to vector<8x1xf32>
    %56 = tpu.concatenate %52, %55 in 1 : vector<8x1xf32>, vector<8x1xf32> -> vector<8x2xf32>
    %cst_25 = arith.constant 3.906250e-03 : f32
    %57 = vector.broadcast %cst_25 : f32 to vector<8x2xf32>
    %58 = arith.mulf %56, %57 : vector<8x2xf32>
    %59 = vector.broadcast %2 : vector<8x1xf32> to vector<8x2xf32>
    %60 = arith.mulf %58, %59 : vector<8x2xf32>
    %cst_26 = arith.constant dense<0.000000e+00> : vector<2xf32>
    %61 = vector.multi_reduction <add>, %60, %cst_26 [0] : vector<8x2xf32> to vector<2xf32>
    %62 = vector.shape_cast %61 : vector<2xf32> to vector<1x2xf32>
    %63 = vector.broadcast %6 : vector<1x1xf32> to vector<1x2xf32>
    %64 = arith.addf %62, %63 : vector<1x2xf32>
    %65 = vector.broadcast %64 : vector<1x2xf32> to vector<16x2xf32>
    %66 = vector.broadcast %3 : vector<16x1xf32> to vector<16x2xf32>
    %67 = arith.mulf %65, %66 : vector<16x2xf32>
    %68 = vector.broadcast %4 : vector<16x1xf32> to vector<16x2xf32>
    %69 = arith.addf %67, %68 : vector<16x2xf32>
    %cst_27 = arith.constant 0.000000e+00 : f32
    %70 = vector.broadcast %cst_27 : f32 to vector<16x2xf32>
    %71 = arith.maximumf %69, %70 : vector<16x2xf32>
    %72 = vector.broadcast %5 : vector<16x1xf32> to vector<16x2xf32>
    %73 = arith.mulf %71, %72 : vector<16x2xf32>
    %cst_28 = arith.constant dense<0.000000e+00> : vector<2xf32>
    %74 = vector.multi_reduction <add>, %73, %cst_28 [0] : vector<16x2xf32> to vector<2xf32>
    %75 = vector.shape_cast %74 : vector<2xf32> to vector<1x2xf32>
    %76 = vector.broadcast %7 : vector<1x1xf32> to vector<1x2xf32>
    %77 = arith.addf %75, %76 : vector<1x2xf32>
    %cst_29 = arith.constant 0.000000e+00 : f32
    %78 = vector.broadcast %cst_29 : f32 to vector<1x126xf32>
    %79 = tpu.concatenate %77, %78 in 1 : vector<1x2xf32>, vector<1x126xf32> -> vector<1x128xf32>
    %80 = vector.shape_cast %79 : vector<1x128xf32> to vector<1x128xf32>
    %81 = vector.broadcast %80 : vector<1x128xf32> to vector<8x128xf32>
    %c0_30 = arith.constant 0 : index
    %c0_31 = arith.constant 0 : index
    %82 = vector.load %arg5[%c0_30, %c0_31] : memref<8x128xf32, #tpu.memory_space<vmem>>, vector<8x128xf32>
    tpu.vector_store %arg5[%c0_30, %c0_31], %81 {strides = array<i32>} : memref<8x128xf32, #tpu.memory_space<vmem>>, vector<8x128xf32>,
    return
  }
  func.func @transform_0(%arg0: i32) -> (i32, i32) {
    %c0_i32 = arith.constant 0 : i32
    %c0_i32_0 = arith.constant 0 : i32
    %c0_i32_1 = arith.constant 0 : i32
    return %c0_i32, %c0_i32_0 : i32, i32
  }
  func.func @transform_1(%arg0: i32) -> (i32, i32) {
    %c0_i32 = arith.constant 0 : i32
    %c0_i32_0 = arith.constant 0 : i32
    %c0_i32_1 = arith.constant 0 : i32
    return %c0_i32, %c0_i32_0 : i32, i32
  }
  func.func @transform_2(%arg0: i32) -> (i32, i32) {
    %c0_i32 = arith.constant 0 : i32
    %c0_i32_0 = arith.constant 0 : i32
    %c0_i32_1 = arith.constant 0 : i32
    return %c0_i32, %c0_i32_0 : i32, i32
  }
  func.func @transform_3(%arg0: i32) -> (i32, i32) {
    %c0_i32 = arith.constant 0 : i32
    %c0_i32_0 = arith.constant 0 : i32
    %c0_i32_1 = arith.constant 0 : i32
    return %c0_i32, %c0_i32_0 : i32, i32
  }
  func.func @transform_4(%arg0: i32) -> (i32, i32) {
    %c0_i32 = arith.constant 0 : i32
    %c0_i32_0 = arith.constant 0 : i32
    %c0_i32_1 = arith.constant 0 : i32
    return %c0_i32, %c0_i32_0 : i32, i32
  }
}

</mosaic_0001>

<llo_original>
// kernel: dynamics_forward.1
$region0: #{dynamics_forward.1}
  #allocation0 [shape = 'u32[]', space=smem, size = 0x4, offset = 0x4, fixed_abs, tag = 'smem constant byte address 0x4 - core index']
  #allocation1 [shape = 'u32[144,128]{1,0:T(1,128)}', space=vmem, size = 0x12000, scoped, tag = 'internal scratch']
  %s0 = inlined_call_operand.vmem [shape: f32[8,512], index: 0, kind: input, shape index: {}]
  %s1 = inlined_call_operand.vmem [shape: f32[8,512], index: 1, kind: input, shape index: {}]
  %s2 = inlined_call_operand.vmem [shape: f32[40,512], index: 2, kind: input, shape index: {}]
  %s3 = inlined_call_operand.vmem [shape: f32[8,512], index: 3, kind: output, shape index: {0}]
  %s4 = inlined_call_operand.vmem [shape: f32[8,128], index: 4, kind: output, shape index: {1}]
  %5 = xla_tuple %s3, %s4
  %s6 = sld [smem:[#allocation0]]
  $region30: #{dynamics_forward.1} parent=0
    _
  %s8 = ssub.s32 1, %s6
  %s9 = scalar_select 0, %s8, %s6
  // Predicated region
  $region2: #{dynamics_forward.1} parent=0 // pred_check
    _
  $region3: #{dynamics_forward.1} parent=0 // pred_check_branch
    %11 = sbr.rel (0) target = $region5
  $region4: #{dynamics_forward.1} parent=0 // pred_region
    _
  $region5: #{dynamics_forward.1} parent=0 // pred_fallthru
    _
  // Predicated region
  $region6: #{dynamics_forward.1} parent=0 // pred_check
    _
  $region7: #{dynamics_forward.1} parent=0 // pred_check_branch
    %13 = sbr.rel (0) target = $region9
  $region8: #{dynamics_forward.1} parent=0 // pred_region
    _
  $region9: #{dynamics_forward.1} parent=0 // pred_fallthru
    _
  // Predicated region
  $region10: #{dynamics_forward.1} parent=0 // pred_check
    _
  $region11: #{dynamics_forward.1} parent=0 // pred_check_branch
    %15 = sbr.rel (0) target = $region13
  $region12: #{dynamics_forward.1} parent=0 // pred_region
    _
  $region13: #{dynamics_forward.1} parent=0 // pred_fallthru
    _
  %v16 = vld [vmem:[%s2] sm:$0xff]
  %v17 = vld [vmem:[%s2 + $0x40] sm:$0xfe]
  %v18 = vld [vmem:[%s2 + $0x60] sm:$0xff]
  %v19 = vld [vmem:[%s2 + $0x80] sm:$0x1]
  %v20 = vld [vmem:[%s2 + $0x41] ss:$0 sm:$0xff]
  %v21 = vld [vmem:[%s0] sm:$0xff]
  %v22 = vld [vmem:[%s0 + $0x8] sm:$0xff]
  %v23 = vld [vmem:[%s0 + $0x10] sm:$0xff]
  %v24 = vld [vmem:[%s0 + $0x18] sm:$0xff]
  %v25 = vld [vmem:[%s1] sm:$0xff]
  %v26 = vld [vmem:[%s1 + $0x8] sm:$0xff]
  %v27 = vld [vmem:[%s1 + $0x10] sm:$0xff]
  %v28 = vld [vmem:[%s1 + $0x18] sm:$0xff]
  %v29 = vadd.f32 %v21, %v25
  %v30 = vadd.f32 %v22, %v26
  %v31 = vadd.f32 %v23, %v27
  %v32 = vadd.f32 %v24, %v28
  %33 = vrot.lane.b32.xlu0 %v29, 17
  %v34 = vpop.permute.xlu0 %33
  %35 = vrot.lane.b32.xlu0 %v30, 17
  %v36 = vpop.permute.xlu0 %35
  %37 = vrot.lane.b32.xlu0 %v31, 17
  %v38 = vpop.permute.xlu0 %37
  %39 = vrot.lane.b32.xlu0 %v32, 17
  %v40 = vpop.permute.xlu0 %39
  %v41 = vlaneseq
  %v42 = vand.u32 %v41, 127
  %vm43 = vcmp.lt.s32.totalorder %v42, 17
  %v44 = vsel %vm43, %v38, %v40
  %v45 = vsel %vm43, %v36, %v38
  %v46 = vsel %vm43, %v34, %v36
  %v47 = vsel %vm43, %v40, %v34
  %s48 = scalar_lea.vmem %s2, 32
  %v49 = vld [vmem:[%s48] ss:$8 sm:$0xf]
  %v51 = vlaneseq
  %v52 = vshrl.u32 %v51, 7
  %v53 = vsub.s32 0, %v52
  %v54 = vrot.slane %v49, %v53
  %v55 = vlaneseq
  %v56 = vshrl.u32 %v55, 7
  %v57 = vsub.s32 1, %v56
  %v58 = vrot.slane %v49, %v57
  %v59 = vlaneseq
  %v60 = vshrl.u32 %v59, 7
  %v61 = vsub.s32 2, %v60
  %v62 = vrot.slane %v49, %v61
  %v63 = vlaneseq
  %v64 = vshrl.u32 %v63, 7
  %v65 = vsub.s32 3, %v64
  %v66 = vrot.slane %v49, %v65
  %v71 = vmul.f32 %v47, %v54
  %v72 = vmul.f32 %v46, %v58
  %v73 = vmul.f32 %v45, %v62
  %v74 = vmul.f32 %v44, %v66
  %75 = vrot.lane.b32.xlu0 %v29, 16
  %v76 = vpop.permute.xlu0 %75
  %77 = vrot.lane.b32.xlu0 %v30, 16
  %v78 = vpop.permute.xlu0 %77
  %79 = vrot.lane.b32.xlu0 %v31, 16
  %v80 = vpop.permute.xlu0 %79
  %81 = vrot.lane.b32.xlu0 %v32, 16
  %v82 = vpop.permute.xlu0 %81
  %vm83 = vcmp.lt.s32.totalorder %v42, 16
  %v84 = vsel %vm83, %v80, %v82
  %v85 = vsel %vm83, %v78, %v80
  %v86 = vsel %vm83, %v76, %v78
  %v87 = vsel %vm83, %v82, %v76
  %s88 = scalar_lea.vmem %s2, 33
  %v89 = vld [vmem:[%s88] ss:$8 sm:$0xf]
  %v91 = vlaneseq
  %v92 = vshrl.u32 %v91, 7
  %v93 = vsub.s32 0, %v92
  %v94 = vrot.slane %v89, %v93
  %v95 = vlaneseq
  %v96 = vshrl.u32 %v95, 7
  %v97 = vsub.s32 1, %v96
  %v98 = vrot.slane %v89, %v97
  %v99 = vlaneseq
  %v100 = vshrl.u32 %v99, 7
  %v101 = vsub.s32 2, %v100
  %v102 = vrot.slane %v89, %v101
  %v103 = vlaneseq
  %v104 = vshrl.u32 %v103, 7
  %v105 = vsub.s32 3, %v104
  %v106 = vrot.slane %v89, %v105
  %v111 = vmul.f32 %v87, %v94
  %v112 = vmul.f32 %v86, %v98
  %v113 = vmul.f32 %v85, %v102
  %v114 = vmul.f32 %v84, %v106
  %115 = vrot.lane.b32.xlu0 %v29, 15
  %v116 = vpop.permute.xlu0 %115
  %117 = vrot.lane.b32.xlu0 %v30, 15
  %v118 = vpop.permute.xlu0 %117
  %119 = vrot.lane.b32.xlu0 %v31, 15
  %v120 = vpop.permute.xlu0 %119
  %121 = vrot.lane.b32.xlu0 %v32, 15
  %v122 = vpop.permute.xlu0 %121
  %vm123 = vcmp.lt.s32.totalorder %v42, 15
  %v124 = vsel %vm123, %v120, %v122
  %v125 = vsel %vm123, %v118, %v120
  %v126 = vsel %vm123, %v116, %v118
  %v127 = vsel %vm123, %v122, %v116
  %s128 = scalar_lea.vmem %s2, 34
  %v129 = vld [vmem:[%s128] ss:$8 sm:$0xf]
  %v131 = vlaneseq
  %v132 = vshrl.u32 %v131, 7
  %v133 = vsub.s32 0, %v132
  %v134 = vrot.slane %v129, %v133
  %v135 = vlaneseq
  %v136 = vshrl.u32 %v135, 7
  %v137 = vsub.s32 1, %v136
  %v138 = vrot.slane %v129, %v137
  %v139 = vlaneseq
  %v140 = vshrl.u32 %v139, 7
  %v141 = vsub.s32 2, %v140
  %v142 = vrot.slane %v129, %v141
  %v143 = vlaneseq
  %v144 = vshrl.u32 %v143, 7
  %v145 = vsub.s32 3, %v144
  %v146 = vrot.slane %v129, %v145
  %v151 = vmul.f32 %v127, %v134
  %v152 = vmul.f32 %v126, %v138
  %v153 = vmul.f32 %v125, %v142
  %v154 = vmul.f32 %v124, %v146
  %155 = vrot.lane.b32.xlu0 %v29, 1
  %v156 = vpop.permute.xlu0 %155
  %157 = vrot.lane.b32.xlu0 %v30, 1
  %v158 = vpop.permute.xlu0 %157
  %159 = vrot.lane.b32.xlu0 %v31, 1
  %v160 = vpop.permute.xlu0 %159
  %161 = vrot.lane.b32.xlu0 %v32, 1
  %v162 = vpop.permute.xlu0 %161
  %vm163 = vcmp.lt.s32.totalorder %v42, 1
  %v164 = vsel %vm163, %v160, %v162
  %v165 = vsel %vm163, %v158, %v160
  %v166 = vsel %vm163, %v156, %v158
  %v167 = vsel %vm163, %v162, %v156
  %s168 = scalar_lea.vmem %s2, 35
  %v169 = vld [vmem:[%s168] ss:$8 sm:$0xf]
  %v171 = vlaneseq
  %v172 = vshrl.u32 %v171, 7
  %v173 = vsub.s32 0, %v172
  %v174 = vrot.slane %v169, %v173
  %v175 = vlaneseq
  %v176 = vshrl.u32 %v175, 7
  %v177 = vsub.s32 1, %v176
  %v178 = vrot.slane %v169, %v177
  %v179 = vlaneseq
  %v180 = vshrl.u32 %v179, 7
  %v181 = vsub.s32 2, %v180
  %v182 = vrot.slane %v169, %v181
  %v183 = vlaneseq
  %v184 = vshrl.u32 %v183, 7
  %v185 = vsub.s32 3, %v184
  %v186 = vrot.slane %v169, %v185
  %v191 = vmul.f32 %v167, %v174
  %v192 = vmul.f32 %v166, %v178
  %v193 = vmul.f32 %v165, %v182
  %v194 = vmul.f32 %v164, %v186
  %195 = vrot.lane.b32.xlu0 %v29, 127
  %v196 = vpop.permute.xlu0 %195
  %197 = vrot.lane.b32.xlu0 %v30, 127
  %v198 = vpop.permute.xlu0 %197
  %199 = vrot.lane.b32.xlu0 %v31, 127
  %v200 = vpop.permute.xlu0 %199
  %201 = vrot.lane.b32.xlu0 %v32, 127
  %v202 = vpop.permute.xlu0 %201
  %vm203 = vcmp.lt.s32.totalorder %v42, 127
  %v204 = vsel %vm203, %v200, %v202
  %v205 = vsel %vm203, %v198, %v200
  %v206 = vsel %vm203, %v196, %v198
  %v207 = vsel %vm203, %v202, %v196
  %s208 = scalar_lea.vmem %s2, 37
  %v209 = vld [vmem:[%s208] ss:$8 sm:$0xf]
  %v211 = vlaneseq
  %v212 = vshrl.u32 %v211, 7
  %v213 = vsub.s32 0, %v212
  %v214 = vrot.slane %v209, %v213
  %v215 = vlaneseq
  %v216 = vshrl.u32 %v215, 7
  %v217 = vsub.s32 1, %v216
  %v218 = vrot.slane %v209, %v217
  %v219 = vlaneseq
  %v220 = vshrl.u32 %v219, 7
  %v221 = vsub.s32 2, %v220
  %v222 = vrot.slane %v209, %v221
  %v223 = vlaneseq
  %v224 = vshrl.u32 %v223, 7
  %v225 = vsub.s32 3, %v224
  %v226 = vrot.slane %v209, %v225
  %v231 = vmul.f32 %v206, %v214
  %v232 = vmul.f32 %v205, %v218
  %v233 = vmul.f32 %v204, %v222
  %v234 = vmul.f32 %v207, %v226
  %235 = vrot.lane.b32.xlu0 %v29, 113
  %v236 = vpop.permute.xlu0 %235
  %237 = vrot.lane.b32.xlu0 %v30, 113
  %v238 = vpop.permute.xlu0 %237
  %239 = vrot.lane.b32.xlu0 %v31, 113
  %v240 = vpop.permute.xlu0 %239
  %241 = vrot.lane.b32.xlu0 %v32, 113
  %v242 = vpop.permute.xlu0 %241
  %vm243 = vcmp.lt.s32.totalorder %v42, 113
  %v244 = vsel %vm243, %v240, %v242
  %v245 = vsel %vm243, %v238, %v240
  %v246 = vsel %vm243, %v236, %v238
  %v247 = vsel %vm243, %v242, %v236
  %s248 = scalar_lea.vmem %s2, 38
  %v249 = vld [vmem:[%s248] ss:$8 sm:$0xf]
  %v251 = vlaneseq
  %v252 = vshrl.u32 %v251, 7
  %v253 = vsub.s32 0, %v252
  %v254 = vrot.slane %v249, %v253
  %v255 = vlaneseq
  %v256 = vshrl.u32 %v255, 7
  %v257 = vsub.s32 1, %v256
  %v258 = vrot.slane %v249, %v257
  %v259 = vlaneseq
  %v260 = vshrl.u32 %v259, 7
  %v261 = vsub.s32 2, %v260
  %v262 = vrot.slane %v249, %v261
  %v263 = vlaneseq
  %v264 = vshrl.u32 %v263, 7
  %v265 = vsub.s32 3, %v264
  %v266 = vrot.slane %v249, %v265
  %v271 = vmul.f32 %v246, %v254
  %v272 = vmul.f32 %v245, %v258
  %v273 = vmul.f32 %v244, %v262
  %v274 = vmul.f32 %v247, %v266
  %275 = vrot.lane.b32.xlu0 %v29, 112
  %v276 = vpop.permute.xlu0 %275
  %277 = vrot.lane.b32.xlu0 %v30, 112
  %v278 = vpop.permute.xlu0 %277
  %279 = vrot.lane.b32.xlu0 %v31, 112
  %v280 = vpop.permute.xlu0 %279
  %281 = vrot.lane.b32.xlu0 %v32, 112
  %v282 = vpop.permute.xlu0 %281
  %vm283 = vcmp.lt.s32.totalorder %v42, 112
  %v284 = vsel %vm283, %v280, %v282
  %v285 = vsel %vm283, %v278, %v280
  %v286 = vsel %vm283, %v276, %v278
  %v287 = vsel %vm283, %v282, %v276
  %s288 = scalar_lea.vmem %s2, 39
  %v289 = vld [vmem:[%s288] ss:$8 sm:$0xf]
  %v291 = vlaneseq
  %v292 = vshrl.u32 %v291, 7
  %v293 = vsub.s32 0, %v292
  %v294 = vrot.slane %v289, %v293
  %v295 = vlaneseq
  %v296 = vshrl.u32 %v295, 7
  %v297 = vsub.s32 1, %v296
  %v298 = vrot.slane %v289, %v297
  %v299 = vlaneseq
  %v300 = vshrl.u32 %v299, 7
  %v301 = vsub.s32 2, %v300
  %v302 = vrot.slane %v289, %v301
  %v303 = vlaneseq
  %v304 = vshrl.u32 %v303, 7
  %v305 = vsub.s32 3, %v304
  %v306 = vrot.slane %v289, %v305
  %v311 = vmul.f32 %v286, %v294
  %v312 = vmul.f32 %v285, %v298
  %v313 = vmul.f32 %v284, %v302
  %v314 = vmul.f32 %v287, %v306
  %315 = vrot.lane.b32.xlu0 %v29, 111
  %v316 = vpop.permute.xlu0 %315
  %317 = vrot.lane.b32.xlu0 %v30, 111
  %v318 = vpop.permute.xlu0 %317
  %319 = vrot.lane.b32.xlu0 %v31, 111
  %v320 = vpop.permute.xlu0 %319
  %321 = vrot.lane.b32.xlu0 %v32, 111
  %v322 = vpop.permute.xlu0 %321
  %vm323 = vcmp.lt.s32.totalorder %v42, 111
  %v324 = vsel %vm323, %v320, %v322
  %v325 = vsel %vm323, %v318, %v320
  %v326 = vsel %vm323, %v316, %v318
  %v327 = vsel %vm323, %v322, %v316
  %s328 = scalar_lea.vmem %s2, 64
  %v329 = vld [vmem:[%s328] ss:$8 sm:$0xf]
  %v331 = vlaneseq
  %v332 = vshrl.u32 %v331, 7
  %v333 = vsub.s32 0, %v332
  %v334 = vrot.slane %v329, %v333
  %v335 = vlaneseq
  %v336 = vshrl.u32 %v335, 7
  %v337 = vsub.s32 1, %v336
  %v338 = vrot.slane %v329, %v337
  %v339 = vlaneseq
  %v340 = vshrl.u32 %v339, 7
  %v341 = vsub.s32 2, %v340
  %v342 = vrot.slane %v329, %v341
  %v343 = vlaneseq
  %v344 = vshrl.u32 %v343, 7
  %v345 = vsub.s32 3, %v344
  %v346 = vrot.slane %v329, %v345
  %v351 = vmul.f32 %v326, %v334
  %v352 = vmul.f32 %v325, %v338
  %v353 = vmul.f32 %v324, %v342
  %v354 = vmul.f32 %v327, %v346
  %356 = vset.pattern.permute.xlu0 72
  %357 = vperm.xlu0 %356, %v16
  %v358 = vpop.permute.xlu0 %357
  %vm360 = vcmask 588800
  %v361 = vsel %vm360, %v16, 0
  %363 = vmatprep.subr.mxu0 %v72
  %364 = vmatpush1.msra.mxu0 %v71
  %365 = vmatprep.subr.mxu0 %v112
  %366 = vmatpush1.msra.mxu0 %v111
  %367 = vmatprep.subr.mxu0 %v152
  %368 = vmatpush1.msra.mxu0 %v151
  %369 = vmatprep.subr.mxu0 %v192
  %370 = vmatpush1.msra.mxu0 %v191
  %371 = vmatprep.subr.mxu0 %v30
  %372 = vmatpush1.msra.mxu0 %v29
  %373 = vmatprep.subr.mxu0 %v232
  %374 = vmatpush1.msra.mxu0 %v231
  %375 = vmatprep.subr.mxu0 %v272
  %376 = vmatpush1.msra.mxu0 %v271
  %377 = vmatprep.subr.mxu0 %v312
  %378 = vmatpush1.msra.mxu0 %v311
  %379 = vmatprep.subr.mxu0 %v352
  %380 = vmatpush1.msra.mxu0 %v351
  %381 = vmatprep.subr.mxu0 0.0
  %382 = vmatpush1.msra.mxu0 0.0
  %383 = vmatprep.subr.mxu0 0.0
  %384 = vmatpush1.msra.mxu0 0.0
  %385 = vmatprep.subr.mxu0 0.0
  %386 = vmatpush1.msra.mxu0 0.0
  %387 = vmatprep.subr.mxu0 0.0
  %388 = vmatpush1.msra.mxu0 0.0
  %389 = vmatprep.subr.mxu0 0.0
  %390 = vmatpush1.msra.mxu0 0.0
  %391 = vmatprep.subr.mxu0 0.0
  %392 = vmatpush1.msra.mxu0 0.0
  %393 = vmatprep.subr.mxu0 0.0
  %394 = vmatpush1.msra.mxu0 0.0
  %395 = vmatprep.subr.mxu0 0.0
  %396 = vmatpush1.msra.mxu0 0.0
  %397 = vmatprep.subr.mxu0 0.0
  %398 = vmatpush1.msra.mxu0 0.0
  %399 = vmatprep.subr.mxu0 0.0
  %400 = vmatpush1.msra.mxu0 0.0
  %401 = vmatprep.subr.mxu0 0.0
  %402 = vmatpush1.msra.mxu0 0.0
  %403 = vmatprep.subr.mxu0 0.0
  %404 = vmatpush1.msra.mxu0 0.0
  %405 = vmatprep.subr.mxu0 0.0
  %406 = vmatpush1.msra.mxu0 0.0
  %407 = vmatprep.subr.mxu0 0.0
  %408 = vmatpush1.msra.mxu0 0.0
  %409 = vmatprep.subr.mxu0 0.0
  %410 = vmatpush1.msra.mxu0 0.0
  %411 = vmatprep.subr.mxu0 0.0
  %412 = vmatpush1.msra.mxu0 0.0
  %413 = vmatprep.subr.mxu0 0.0
  %414 = vmatpush1.msra.mxu0 0.0
  %415 = vmatprep.subr.mxu0 0.0
  %416 = vmatpush1.msra.mxu0 0.0
  %417 = vmatprep.subr.mxu0 0.0
  %418 = vmatpush1.msra.mxu0 0.0
  %419 = vmatprep.subr.mxu0 0.0
  %420 = vmatpush1.msra.mxu0 0.0
  %421 = vmatprep.subr.mxu0 0.0
  %422 = vmatpush1.msra.mxu0 0.0
  %423 = vmatprep.subr.mxu0 0.0
  %424 = vmatpush1.msra.mxu0 0.0
  %425 = vmatprep.subr.mxu0 0.0
  %426 = vmatpush1.msra.mxu0 0.0
  %427 = vmatprep.mubr.f32.mxu0 0.0
  %428 = vmatmul.mubr.f32.gmra.mrb[0].mxu0 %v361
  %v429 = vpop.f32.mrb[0].mxu0
  %v430 = vadd.f32 %v358, %v429
  %v431 = vpop.f32.mrb[0].mxu0
  %v432 = vadd.f32 %v358, %v431
  %433 = vdwg.mxu0
  %434 = vmatprep.subr.mxu0 %v74
  %435 = vmatpush1.msra.mxu0 %v73
  %436 = vmatprep.subr.mxu0 %v114
  %437 = vmatpush1.msra.mxu0 %v113
  %438 = vmatprep.subr.mxu0 %v154
  %439 = vmatpush1.msra.mxu0 %v153
  %440 = vmatprep.subr.mxu0 %v194
  %441 = vmatpush1.msra.mxu0 %v193
  %442 = vmatprep.subr.mxu0 %v32
  %443 = vmatpush1.msra.mxu0 %v31
  %444 = vmatprep.subr.mxu0 %v234
  %445 = vmatpush1.msra.mxu0 %v233
  %446 = vmatprep.subr.mxu0 %v274
  %447 = vmatpush1.msra.mxu0 %v273
  %448 = vmatprep.subr.mxu0 %v314
  %449 = vmatpush1.msra.mxu0 %v313
  %450 = vmatprep.subr.mxu0 %v354
  %451 = vmatpush1.msra.mxu0 %v353
  %452 = vmatprep.subr.mxu0 0.0
  %453 = vmatpush1.msra.mxu0 0.0
  %454 = vmatprep.subr.mxu0 0.0
  %455 = vmatpush1.msra.mxu0 0.0
  %456 = vmatprep.subr.mxu0 0.0
  %457 = vmatpush1.msra.mxu0 0.0
  %458 = vmatprep.subr.mxu0 0.0
  %459 = vmatpush1.msra.mxu0 0.0
  %460 = vmatprep.subr.mxu0 0.0
  %461 = vmatpush1.msra.mxu0 0.0
  %462 = vmatprep.subr.mxu0 0.0
  %463 = vmatpush1.msra.mxu0 0.0
  %464 = vmatprep.subr.mxu0 0.0
  %465 = vmatpush1.msra.mxu0 0.0
  %466 = vmatprep.subr.mxu0 0.0
  %467 = vmatpush1.msra.mxu0 0.0
  %468 = vmatprep.subr.mxu0 0.0
  %469 = vmatpush1.msra.mxu0 0.0
  %470 = vmatprep.subr.mxu0 0.0
  %471 = vmatpush1.msra.mxu0 0.0
  %472 = vmatprep.subr.mxu0 0.0
  %473 = vmatpush1.msra.mxu0 0.0
  %474 = vmatprep.subr.mxu0 0.0
  %475 = vmatpush1.msra.mxu0 0.0
  %476 = vmatprep.subr.mxu0 0.0
  %477 = vmatpush1.msra.mxu0 0.0
  %478 = vmatprep.subr.mxu0 0.0
  %479 = vmatpush1.msra.mxu0 0.0
  %480 = vmatprep.subr.mxu0 0.0
  %481 = vmatpush1.msra.mxu0 0.0
  %482 = vmatprep.subr.mxu0 0.0
  %483 = vmatpush1.msra.mxu0 0.0
  %484 = vmatprep.subr.mxu0 0.0
  %485 = vmatpush1.msra.mxu0 0.0
  %486 = vmatprep.subr.mxu0 0.0
  %487 = vmatpush1.msra.mxu0 0.0
  %488 = vmatprep.subr.mxu0 0.0
  %489 = vmatpush1.msra.mxu0 0.0
  %490 = vmatprep.subr.mxu0 0.0
  %491 = vmatpush1.msra.mxu0 0.0
  %492 = vmatprep.subr.mxu0 0.0
  %493 = vmatpush1.msra.mxu0 0.0
  %494 = vmatprep.subr.mxu0 0.0
  %495 = vmatpush1.msra.mxu0 0.0
  %496 = vmatprep.subr.mxu0 0.0
  %497 = vmatpush1.msra.mxu0 0.0
  %498 = vmatprep.mubr.f32.mxu0 0.0
  %499 = vmatmul.mubr.f32.gmra.mrb[0].mxu0 %v361
  %v500 = vpop.f32.mrb[0].mxu0
  %v501 = vadd.f32 %v358, %v500
  %v502 = vpop.f32.mrb[0].mxu0
  %v503 = vadd.f32 %v358, %v502
  %504 = vdwg.mxu0
  %v505 = vmax.f32 %v430, 0.0
  %v506 = vmax.f32 %v432, 0.0
  %v507 = vmax.f32 %v501, 0.0
  %v508 = vmax.f32 %v503, 0.0
  %509 = vst [vmem:[%s3] sm:$0xff] %v505
  %510 = vst [vmem:[%s3 + $0x8] sm:$0xff] %v506
  %511 = vst [vmem:[%s3 + $0x10] sm:$0xff] %v507
  %512 = vst [vmem:[%s3 + $0x18] sm:$0xff] %v508
  %v513 = vadd.f32 %v505, %v506
  %514 = vadd.xlane.f32.xlu0 %v513
  %v515 = vpop.xlane.xlu0 %514
  %v516 = vadd.f32 %v507, %v508
  %517 = vadd.xlane.f32.xlu0 %v516
  %v518 = vpop.xlane.xlu0 %517
  %vm519 = vcmask 7168
  %v520 = vsel %vm519, %v515, %v518
  %v521 = vmul.f32 %v520, 0.00390625
  %522 = vset.pattern.permute.xlu0 73
  %523 = vperm.xlu0 %522, %v16
  %v524 = vpop.permute.xlu0 %523
  %v526 = vmul.f32 %v521, %v524
  %vm527 = vcmask 15360
  %v528 = vsel %vm527, %v526, 0.0
  %v529 = vrot.slane %v528, 4
  %v530 = vadd.f32 %v528, %v529
  %v531 = vrot.slane %v530, 2
  %v532 = vadd.f32 %v530, %v531
  %v533 = vrot.slane %v532, 1
  %v534 = vadd.f32 %v532, %v533
  %536 = vset.pattern.permute.xlu0 3
  %537 = vperm.xlu0 %536, %v20
  %v538 = vpop.permute.xlu0 %537
  %v540 = vadd.f32 %v534, %v538
  %542 = vset.pattern.permute.xlu0 0
  %543 = vperm.xlu0 %542, %v17
  %v544 = vpop.permute.xlu0 %543
  %547 = vset.pattern.permute.xlu0 0
  %548 = vperm.xlu0 %547, %v18
  %v549 = vpop.permute.xlu0 %548
  %552 = vset.pattern.permute.xlu0 0
  %553 = vperm.xlu0 %552, %v19
  %v554 = vpop.permute.xlu0 %553
  %v556 = vmul.f32 %v540, %v544
  %v557 = vmul.f32 %v540, %v549
  %v558 = vmul.f32 %v540, %v554
  %559 = vset.pattern.permute.xlu0 1
  %560 = vperm.xlu0 %559, %v17
  %v561 = vpop.permute.xlu0 %560
  %563 = vset.pattern.permute.xlu0 1
  %564 = vperm.xlu0 %563, %v18
  %v565 = vpop.permute.xlu0 %564
  %567 = vset.pattern.permute.xlu0 1
  %568 = vperm.xlu0 %567, %v19
  %v569 = vpop.permute.xlu0 %568
  %v571 = vadd.f32 %v556, %v561
  %v572 = vadd.f32 %v557, %v565
  %v573 = vadd.f32 %v558, %v569
  %v574 = vmax.f32 %v571, 0.0
  %v575 = vmax.f32 %v572, 0.0
  %v576 = vmax.f32 %v573, 0.0
  %577 = vset.pattern.permute.xlu0 2
  %578 = vperm.xlu0 %577, %v17
  %v579 = vpop.permute.xlu0 %578
  %581 = vset.pattern.permute.xlu0 2
  %582 = vperm.xlu0 %581, %v18
  %v583 = vpop.permute.xlu0 %582
  %585 = vset.pattern.permute.xlu0 2
  %586 = vperm.xlu0 %585, %v19
  %v587 = vpop.permute.xlu0 %586
  %v589 = vmul.f32 %v574, %v579
  %v590 = vmul.f32 %v575, %v583
  %v591 = vmul.f32 %v576, %v587
  %vm595 = vcmask 1046528
  %v596 = vrot.slane %v589, 1
  %v597 = vrot.slane %v590, 1
  %v598 = vsel %vm595, %v596, %v597
  %v599 = vrot.slane %v591, 1
  %v600 = vsel %vm595, %v597, %v599
  %v603 = vsel %vm527, %v598, 0.0
  %v604 = vsel %vm527, %v600, 0.0
  %v605 = vadd.f32 %v603, %v604
  %v606 = vrot.slane %v605, 4
  %v607 = vadd.f32 %v605, %v606
  %v608 = vrot.slane %v607, 2
  %v609 = vadd.f32 %v607, %v608
  %v610 = vrot.slane %v609, 1
  %v611 = vadd.f32 %v609, %v610
  %612 = vset.pattern.permute.xlu0 4
  %613 = vperm.xlu0 %612, %v20
  %v614 = vpop.permute.xlu0 %613
  %v616 = vadd.f32 %v611, %v614
  %v617 = vsel %vm527, %v616, 0.0
  %v618 = vlaneseq
  %v619 = vshrl.u32 %v618, 7
  %v620 = vsub.s32 0, %v619
  %v621 = vrot.slane %v617, %v620
  %622 = vst [vmem:[%s4] sm:$0xff] %v621
  // Predicated region
  $region14: #{dynamics_forward.1} parent=0 // pred_check
    _
  $region15: #{dynamics_forward.1} parent=0 // pred_check_branch
    %624 = sbr.rel (0) target = $region17
  $region16: #{dynamics_forward.1} parent=0 // pred_region
    _
  $region17: #{dynamics_forward.1} parent=0 // pred_fallthru
    _
  // Predicated region
  $region18: #{dynamics_forward.1} parent=0 // pred_check
    _
  $region19: #{dynamics_forward.1} parent=0 // pred_check_branch
    %626 = sbr.rel (0) target = $region21
  $region20: #{dynamics_forward.1} parent=0 // pred_region
    _
  $region21: #{dynamics_forward.1} parent=0 // pred_fallthru
    _
  // Predicated region
  $region22: #{dynamics_forward.1} parent=0 // pred_check
    _
  $region23: #{dynamics_forward.1} parent=0 // pred_check_branch
    %628 = sbr.rel (0) target = $region25
  $region24: #{dynamics_forward.1} parent=0 // pred_region
    _
  $region25: #{dynamics_forward.1} parent=0 // pred_fallthru
    _
  // Predicated region
  $region26: #{dynamics_forward.1} parent=0 // pred_check
    _
  $region27: #{dynamics_forward.1} parent=0 // pred_check_branch
    %630 = sbr.rel (0) target = $region29
  $region28: #{dynamics_forward.1} parent=0 // pred_region
    _
  $region29: #{dynamics_forward.1} parent=0 // pred_fallthru
    _

</llo_original>
